<compile_context>
chip_gen: v7x
topology: tpu7x:2x2x1
jax: 0.10.0
libtpu: 0.0.40
codegen_flags: <defaults>
</compile_context>

<pallas_src>
import jax
import jax.numpy as jnp
from jax.experimental import pallas as pl
from jax.experimental.pallas import tpu as pltpu


def _round_up(x, m):
    return (x + m - 1) // m * m


def _sepconv_kernel(xp_ref, dw_ref, pw_ref, o_ref):
    """Fused depthwise(3x3, pad=1) + pointwise(1x1) on one (batch, row-tile).

    xp_ref : (1, TH+2, W+2, Cpad)    zero-padded input row tile (1-row halo)
    dw_ref : (3, 3, Cpad)            depthwise taps (zero in padded channels)
    pw_ref : (Cpad, Cout_pad)        pointwise weights (zero in padded rows/cols)
    o_ref  : (1, TH, W, Cout_pad)    output row tile
    """
    TH = o_ref.shape[1]
    W = o_ref.shape[2]
    Cpad = xp_ref.shape[3]
    Cout_pad = o_ref.shape[3]

    # Depthwise 3x3: 9 shifted windows, each scaled per-channel (VPU, f32 —
    # v5e has no bf16 VALU). Live state = one (TH, W, Cpad) accumulator.
    acc = jnp.zeros((TH, W, Cpad), dtype=jnp.float32)
    for kh in range(3):
        for kw in range(3):
            win = xp_ref[0, kh:kh + TH, kw:kw + W, :]
            tap = dw_ref[kh, kw, :]
            acc = acc + win * tap

    # Pointwise 1x1: channel-mixing matmul on the MXU. bf16 operands, f32
    # accumulation; (TH*W, Cpad) x (Cpad, Cout_pad), K and N >= 128.
    y = jnp.dot(
        acc.reshape(TH * W, Cpad).astype(jnp.bfloat16),
        pw_ref[...].astype(jnp.bfloat16),
        preferred_element_type=jnp.float32,
    )
    o_ref[...] = y.reshape(1, TH, W, Cout_pad).astype(o_ref.dtype)


def _pick_row_tile(H, W, Cpad, Cout_pad, budget_bytes=4 * 2**20):
    """Largest divisor of H whose per-step working set fits the budget,
    preferring >= 2 row tiles per image (pipelining / megacore sharding)."""
    def step_bytes(th):
        return 4 * ((th + 2) * (W + 2) * Cpad     # f32 input tile
                    + 2 * th * W * Cpad           # f32 depthwise acc + slack
                    + th * W * Cout_pad)          # output tile
    divisors = sorted((d for d in range(1, H + 1) if H % d == 0), reverse=True)
    for d in divisors:
        if d < H and step_bytes(d) <= budget_bytes:
            return d
    for d in divisors:
        if step_bytes(d) <= budget_bytes:
            return d
    return 1


@jax.jit
def separable_conv2d(x_nchw, dw, pw):
    """x_nchw: (N, C, H, W); dw: (3, 3, C); pw: (C, Cout). Returns (N, Cout, H, W)."""
    N, C, H, W = x_nchw.shape
    Cout = pw.shape[1]
    Cpad = _round_up(C, 128)
    Cout_pad = _round_up(Cout, 128)
    TH = _pick_row_tile(H, W, Cpad, Cout_pad)
    nTH = H // TH

    # Glue (single extra pass, fused under jit): NCHW -> NHWC, zero-pad spatial
    # (padding=1) and channels (lane-dense multiples of 128), then cut
    # overlapping row tiles with a 1-row halo so each grid step is a small,
    # self-contained block (no whole-image residency in VMEM).
    # TODO(synk): if the surrounding model produces/consumes NHWC with C a
    # multiple of 128, the transposes + channel pad (extra HBM passes) vanish.
    x_nhwc = jnp.transpose(x_nchw, (0, 2, 3, 1))
    xp = jnp.pad(x_nhwc, ((0, 0), (1, 1), (1, 1), (0, Cpad - C)))
    xp_tiles = jnp.stack(
        [xp[:, i * TH:i * TH + TH + 2] for i in range(nTH)], axis=1)
    xp_tiles = xp_tiles.reshape(N * nTH, TH + 2, W + 2, Cpad)

    dw_p = jnp.pad(dw, ((0, 0), (0, 0), (0, Cpad - C)))
    pw_p = jnp.pad(pw, ((0, Cpad - C), (0, Cout_pad - Cout)))

    # Per-step VMEM: double-buffered in/out blocks + resident weights + f32
    # accumulator / matmul temporaries, with 2x headroom; clamp to [32, 64] MiB.
    step_vmem = 4 * (2 * (TH + 2) * (W + 2) * Cpad
                     + 2 * TH * W * Cout_pad
                     + 2 * (9 * Cpad + Cpad * Cout_pad)
                     + 3 * TH * W * Cpad)
    vmem_limit = int(min(max(2 * step_vmem, 32 * 2**20), 64 * 2**20))

    out_nhwc = pl.pallas_call(
        _sepconv_kernel,
        out_shape=jax.ShapeDtypeStruct((N, H, W, Cout_pad), x_nchw.dtype),
        grid_spec=pltpu.PrefetchScalarGridSpec(
            num_scalar_prefetch=0,
            grid=(N, nTH),
            in_specs=[
                # Row tiles (flattened (n, h) on dim 0), 1-row halo included.
                pl.BlockSpec((1, TH + 2, W + 2, Cpad),
                             lambda n, h: (n * nTH + h, 0, 0, 0)),
                # Constant index maps -> weights stay resident, no per-step DMA.
                pl.BlockSpec((3, 3, Cpad), lambda n, h: (0, 0, 0)),
                pl.BlockSpec((Cpad, Cout_pad), lambda n, h: (0, 0)),
            ],
            out_specs=pl.BlockSpec((1, TH, W, Cout_pad),
                                   lambda n, h: (n, h, 0, 0)),
        ),
        compiler_params=pltpu.CompilerParams(
            dimension_semantics=("parallel", "parallel"),
            vmem_limit_bytes=vmem_limit,
        ),
    )(xp_tiles, dw_p, pw_p)

    out_nhwc = out_nhwc[..., :Cout]          # strip padded output channels
    return jnp.transpose(out_nhwc, (0, 3, 1, 2))  # back to NCHW


def _init_weights(key, in_channels, out_channels, kernel_size=3):
    """Kaiming-normal (mode='fan_out') init, matching PyTorch's fan computation."""
    k_dw, k_pw = jax.random.split(key)
    # depthwise weight (torch shape (C, 1, k, k)): fan_out = C * k * k
    fan_out_dw = in_channels * kernel_size * kernel_size
    dw_torch = jax.random.normal(
        k_dw, (in_channels, 1, kernel_size, kernel_size), jnp.float32
    ) * jnp.sqrt(2.0 / fan_out_dw)
    # pointwise weight (torch shape (Cout, C, 1, 1)): fan_out = Cout
    fan_out_pw = out_channels
    pw_torch = jax.random.normal(
        k_pw, (out_channels, in_channels, 1, 1), jnp.float32
    ) * jnp.sqrt(2.0 / fan_out_pw)

    # Convert to kernel layout: dw -> (k, k, C); pw -> (C, Cout).
    dw = jnp.transpose(dw_torch[:, 0, :, :], (1, 2, 0))
    pw = jnp.transpose(pw_torch[:, :, 0, 0], (1, 0))
    return dw, pw


def _reference(x_nchw, dw, pw):
    """Pure-JAX reference (lax conv) of the same separable conv, NCHW in/out."""
    C = x_nchw.shape[1]
    # depthwise: lax conv with feature_group_count=C, weights (C, 1, 3, 3)
    dw_oihw = jnp.transpose(dw, (2, 0, 1))[:, None, :, :]
    y = jax.lax.conv_general_dilated(
        x_nchw, dw_oihw, window_strides=(1, 1), padding=((1, 1), (1, 1)),
        dimension_numbers=("NCHW", "OIHW", "NCHW"), feature_group_count=C)
    # pointwise: weights (Cout, C, 1, 1)
    pw_oihw = jnp.transpose(pw, (1, 0))[:, :, None, None]
    z = jax.lax.conv_general_dilated(
        y, pw_oihw, window_strides=(1, 1), padding=((0, 0), (0, 0)),
        dimension_numbers=("NCHW", "OIHW", "NCHW"))
    return z


if __name__ == "__main__":
    key = jax.random.PRNGKey(0)
    k_x, k_w = jax.random.split(key)

    N, C_in, H, W = 2, 4, 16, 16
    C_out = 8

    x = jax.random.normal(k_x, (N, C_in, H, W), jnp.float32)
    dw, pw = _init_weights(k_w, C_in, C_out, kernel_size=3)

    out = jax.block_until_ready(separable_conv2d(x, dw, pw))
    ref = jax.block_until_ready(_reference(x, dw, pw))

    assert out.shape == (N, C_out, H, W), out.shape
    # bf16 MXU operands (f32 accumulation) -> tolerance widened accordingly.
    max_err = float(jnp.max(jnp.abs(out - ref)))
    assert jnp.allclose(out, ref, atol=3e-2, rtol=3e-2), f"mismatch: {max_err}"

    print("KERNEL_OK")
</pallas_src>

<mosaic_0001>
module attributes {stable_mosaic.version = 11 : i64} {
  func.func @_sepconv_kernel(%arg0: i32, %arg1: i32, %arg2: memref<1x10x18x128xf32, #tpu.memory_space<vmem>>, %arg3: memref<3x3x128xf32, #tpu.memory_space<vmem>>, %arg4: memref<128x128xf32, #tpu.memory_space<vmem>>, %arg5: memref<1x8x16x128xf32, #tpu.memory_space<vmem>>) attributes {dimension_semantics = [#tpu.dimension_semantics<parallel>, #tpu.dimension_semantics<parallel>], iteration_bounds = array<i64: 2, 2>, scalar_prefetch = 0 : i64, scratch_operands = 0 : i64, tpu.core_type = #tpu.core_type<tc>, window_params = [{transform_indices = @transform_0, window_bounds = array<i64: 1, 10, 18, 128>}, {pipeline_mode = #tpu.pipeline_mode<synchronous>, transform_indices = @transform_1, window_bounds = array<i64: 3, 3, 128>}, {pipeline_mode = #tpu.pipeline_mode<synchronous>, transform_indices = @transform_2, window_bounds = array<i64: 128, 128>}, {transform_indices = @transform_3, window_bounds = array<i64: 1, 8, 16, 128>}]} {
    %cst = arith.constant 0.000000e+00 : f32
    %0 = vector.broadcast %cst : f32 to vector<8x16x128xf32>
    %c0 = arith.constant 0 : index
    %c0_0 = arith.constant 0 : index
    %c0_1 = arith.constant 0 : index
    %c0_2 = arith.constant 0 : index
    %1 = vector.load %arg2[%c0, %c0_0, %c0_1, %c0_2] : memref<1x10x18x128xf32, #tpu.memory_space<vmem>>, vector<1x8x16x128xf32>
    %2 = vector.shape_cast %1 : vector<1x8x16x128xf32> to vector<8x16x128xf32>
    %c0_3 = arith.constant 0 : index
    %c0_4 = arith.constant 0 : index
    %c0_5 = arith.constant 0 : index
    %3 = vector.load %arg3[%c0_3, %c0_4, %c0_5] : memref<3x3x128xf32, #tpu.memory_space<vmem>>, vector<1x1x128xf32>
    %4 = vector.shape_cast %3 : vector<1x1x128xf32> to vector<128xf32>
    %5 = vector.shape_cast %4 : vector<128xf32> to vector<1x1x128xf32>
    %6 = vector.broadcast %5 : vector<1x1x128xf32> to vector<8x16x128xf32>
    %7 = arith.mulf %2, %6 : vector<8x16x128xf32>
    %8 = arith.addf %0, %7 : vector<8x16x128xf32>
    %c0_6 = arith.constant 0 : index
    %c0_7 = arith.constant 0 : index
    %c1 = arith.constant 1 : index
    %c0_8 = arith.constant 0 : index
    %9 = vector.load %arg2[%c0_6, %c0_7, %c1, %c0_8] : memref<1x10x18x128xf32, #tpu.memory_space<vmem>>, vector<1x8x16x128xf32>
    %10 = vector.shape_cast %9 : vector<1x8x16x128xf32> to vector<8x16x128xf32>
    %c0_9 = arith.constant 0 : index
    %c1_10 = arith.constant 1 : index
    %c0_11 = arith.constant 0 : index
    %11 = vector.load %arg3[%c0_9, %c1_10, %c0_11] : memref<3x3x128xf32, #tpu.memory_space<vmem>>, vector<1x1x128xf32>
    %12 = vector.shape_cast %11 : vector<1x1x128xf32> to vector<128xf32>
    %13 = vector.shape_cast %12 : vector<128xf32> to vector<1x1x128xf32>
    %14 = vector.broadcast %13 : vector<1x1x128xf32> to vector<8x16x128xf32>
    %15 = arith.mulf %10, %14 : vector<8x16x128xf32>
    %16 = arith.addf %8, %15 : vector<8x16x128xf32>
    %c0_12 = arith.constant 0 : index
    %c0_13 = arith.constant 0 : index
    %c2 = arith.constant 2 : index
    %c0_14 = arith.constant 0 : index
    %17 = vector.load %arg2[%c0_12, %c0_13, %c2, %c0_14] : memref<1x10x18x128xf32, #tpu.memory_space<vmem>>, vector<1x8x16x128xf32>
    %18 = vector.shape_cast %17 : vector<1x8x16x128xf32> to vector<8x16x128xf32>
    %c0_15 = arith.constant 0 : index
    %c2_16 = arith.constant 2 : index
    %c0_17 = arith.constant 0 : index
    %19 = vector.load %arg3[%c0_15, %c2_16, %c0_17] : memref<3x3x128xf32, #tpu.memory_space<vmem>>, vector<1x1x128xf32>
    %20 = vector.shape_cast %19 : vector<1x1x128xf32> to vector<128xf32>
    %21 = vector.shape_cast %20 : vector<128xf32> to vector<1x1x128xf32>
    %22 = vector.broadcast %21 : vector<1x1x128xf32> to vector<8x16x128xf32>
    %23 = arith.mulf %18, %22 : vector<8x16x128xf32>
    %24 = arith.addf %16, %23 : vector<8x16x128xf32>
    %c0_18 = arith.constant 0 : index
    %c1_19 = arith.constant 1 : index
    %c0_20 = arith.constant 0 : index
    %c0_21 = arith.constant 0 : index
    %25 = vector.load %arg2[%c0_18, %c1_19, %c0_20, %c0_21] : memref<1x10x18x128xf32, #tpu.memory_space<vmem>>, vector<1x8x16x128xf32>
    %26 = vector.shape_cast %25 : vector<1x8x16x128xf32> to vector<8x16x128xf32>
    %c1_22 = arith.constant 1 : index
    %c0_23 = arith.constant 0 : index
    %c0_24 = arith.constant 0 : index
    %27 = vector.load %arg3[%c1_22, %c0_23, %c0_24] : memref<3x3x128xf32, #tpu.memory_space<vmem>>, vector<1x1x128xf32>
    %28 = vector.shape_cast %27 : vector<1x1x128xf32> to vector<128xf32>
    %29 = vector.shape_cast %28 : vector<128xf32> to vector<1x1x128xf32>
    %30 = vector.broadcast %29 : vector<1x1x128xf32> to vector<8x16x128xf32>
    %31 = arith.mulf %26, %30 : vector<8x16x128xf32>
    %32 = arith.addf %24, %31 : vector<8x16x128xf32>
    %c0_25 = arith.constant 0 : index
    %c1_26 = arith.constant 1 : index
    %c1_27 = arith.constant 1 : index
    %c0_28 = arith.constant 0 : index
    %33 = vector.load %arg2[%c0_25, %c1_26, %c1_27, %c0_28] : memref<1x10x18x128xf32, #tpu.memory_space<vmem>>, vector<1x8x16x128xf32>
    %34 = vector.shape_cast %33 : vector<1x8x16x128xf32> to vector<8x16x128xf32>
    %c1_29 = arith.constant 1 : index
    %c1_30 = arith.constant 1 : index
    %c0_31 = arith.constant 0 : index
    %35 = vector.load %arg3[%c1_29, %c1_30, %c0_31] : memref<3x3x128xf32, #tpu.memory_space<vmem>>, vector<1x1x128xf32>
    %36 = vector.shape_cast %35 : vector<1x1x128xf32> to vector<128xf32>
    %37 = vector.shape_cast %36 : vector<128xf32> to vector<1x1x128xf32>
    %38 = vector.broadcast %37 : vector<1x1x128xf32> to vector<8x16x128xf32>
    %39 = arith.mulf %34, %38 : vector<8x16x128xf32>
    %40 = arith.addf %32, %39 : vector<8x16x128xf32>
    %c0_32 = arith.constant 0 : index
    %c1_33 = arith.constant 1 : index
    %c2_34 = arith.constant 2 : index
    %c0_35 = arith.constant 0 : index
    %41 = vector.load %arg2[%c0_32, %c1_33, %c2_34, %c0_35] : memref<1x10x18x128xf32, #tpu.memory_space<vmem>>, vector<1x8x16x128xf32>
    %42 = vector.shape_cast %41 : vector<1x8x16x128xf32> to vector<8x16x128xf32>
    %c1_36 = arith.constant 1 : index
    %c2_37 = arith.constant 2 : index
    %c0_38 = arith.constant 0 : index
    %43 = vector.load %arg3[%c1_36, %c2_37, %c0_38] : memref<3x3x128xf32, #tpu.memory_space<vmem>>, vector<1x1x128xf32>
    %44 = vector.shape_cast %43 : vector<1x1x128xf32> to vector<128xf32>
    %45 = vector.shape_cast %44 : vector<128xf32> to vector<1x1x128xf32>
    %46 = vector.broadcast %45 : vector<1x1x128xf32> to vector<8x16x128xf32>
    %47 = arith.mulf %42, %46 : vector<8x16x128xf32>
    %48 = arith.addf %40, %47 : vector<8x16x128xf32>
    %c0_39 = arith.constant 0 : index
    %c2_40 = arith.constant 2 : index
    %c0_41 = arith.constant 0 : index
    %c0_42 = arith.constant 0 : index
    %49 = vector.load %arg2[%c0_39, %c2_40, %c0_41, %c0_42] : memref<1x10x18x128xf32, #tpu.memory_space<vmem>>, vector<1x8x16x128xf32>
    %50 = vector.shape_cast %49 : vector<1x8x16x128xf32> to vector<8x16x128xf32>
    %c2_43 = arith.constant 2 : index
    %c0_44 = arith.constant 0 : index
    %c0_45 = arith.constant 0 : index
    %51 = vector.load %arg3[%c2_43, %c0_44, %c0_45] : memref<3x3x128xf32, #tpu.memory_space<vmem>>, vector<1x1x128xf32>
    %52 = vector.shape_cast %51 : vector<1x1x128xf32> to vector<128xf32>
    %53 = vector.shape_cast %52 : vector<128xf32> to vector<1x1x128xf32>
    %54 = vector.broadcast %53 : vector<1x1x128xf32> to vector<8x16x128xf32>
    %55 = arith.mulf %50, %54 : vector<8x16x128xf32>
    %56 = arith.addf %48, %55 : vector<8x16x128xf32>
    %c0_46 = arith.constant 0 : index
    %c2_47 = arith.constant 2 : index
    %c1_48 = arith.constant 1 : index
    %c0_49 = arith.constant 0 : index
    %57 = vector.load %arg2[%c0_46, %c2_47, %c1_48, %c0_49] : memref<1x10x18x128xf32, #tpu.memory_space<vmem>>, vector<1x8x16x128xf32>
    %58 = vector.shape_cast %57 : vector<1x8x16x128xf32> to vector<8x16x128xf32>
    %c2_50 = arith.constant 2 : index
    %c1_51 = arith.constant 1 : index
    %c0_52 = arith.constant 0 : index
    %59 = vector.load %arg3[%c2_50, %c1_51, %c0_52] : memref<3x3x128xf32, #tpu.memory_space<vmem>>, vector<1x1x128xf32>
    %60 = vector.shape_cast %59 : vector<1x1x128xf32> to vector<128xf32>
    %61 = vector.shape_cast %60 : vector<128xf32> to vector<1x1x128xf32>
    %62 = vector.broadcast %61 : vector<1x1x128xf32> to vector<8x16x128xf32>
    %63 = arith.mulf %58, %62 : vector<8x16x128xf32>
    %64 = arith.addf %56, %63 : vector<8x16x128xf32>
    %c0_53 = arith.constant 0 : index
    %c2_54 = arith.constant 2 : index
    %c2_55 = arith.constant 2 : index
    %c0_56 = arith.constant 0 : index
    %65 = vector.load %arg2[%c0_53, %c2_54, %c2_55, %c0_56] : memref<1x10x18x128xf32, #tpu.memory_space<vmem>>, vector<1x8x16x128xf32>
    %66 = vector.shape_cast %65 : vector<1x8x16x128xf32> to vector<8x16x128xf32>
    %c2_57 = arith.constant 2 : index
    %c2_58 = arith.constant 2 : index
    %c0_59 = arith.constant 0 : index
    %67 = vector.load %arg3[%c2_57, %c2_58, %c0_59] : memref<3x3x128xf32, #tpu.memory_space<vmem>>, vector<1x1x128xf32>
    %68 = vector.shape_cast %67 : vector<1x1x128xf32> to vector<128xf32>
    %69 = vector.shape_cast %68 : vector<128xf32> to vector<1x1x128xf32>
    %70 = vector.broadcast %69 : vector<1x1x128xf32> to vector<8x16x128xf32>
    %71 = arith.mulf %66, %70 : vector<8x16x128xf32>
    %72 = arith.addf %64, %71 : vector<8x16x128xf32>
    %73 = vector.shape_cast %72 : vector<8x16x128xf32> to vector<128x128xf32>
    %74 = arith.truncf %73 : vector<128x128xf32> to vector<128x128xbf16>
    %c0_60 = arith.constant 0 : index
    %c0_61 = arith.constant 0 : index
    %75 = vector.load %arg4[%c0_60, %c0_61] : memref<128x128xf32, #tpu.memory_space<vmem>>, vector<128x128xf32>
    %76 = arith.truncf %75 : vector<128x128xf32> to vector<128x128xbf16>
    %cst_62 = arith.constant dense<0.000000e+00> : vector<128x128xf32>
    %77 = tpu.matmul %74, %76, %cst_62 {dimension_numbers = #tpu.dot_dimension_numbers<[1], [0], [0], [1], [0, 0, 1, 1], [], []>} : vector<128x128xbf16>, vector<128x128xbf16>, vector<128x128xf32> -> vector<128x128xf32>
    %78 = vector.shape_cast %77 : vector<128x128xf32> to vector<1x8x16x128xf32>
    %c0_63 = arith.constant 0 : index
    %c0_64 = arith.constant 0 : index
    %c0_65 = arith.constant 0 : index
    %c0_66 = arith.constant 0 : index
    %79 = vector.load %arg5[%c0_63, %c0_64, %c0_65, %c0_66] : memref<1x8x16x128xf32, #tpu.memory_space<vmem>>, vector<1x8x16x128xf32>
    tpu.vector_store %arg5[%c0_63, %c0_64, %c0_65, %c0_66], %78 {strides = array<i32>} : memref<1x8x16x128xf32, #tpu.memory_space<vmem>>, vector<1x8x16x128xf32>,
    return
  }
  func.func @transform_0(%arg0: i32, %arg1: i32) -> (i32, i32, i32, i32) {
    %c2_i32 = arith.constant 2 : i32
    %0 = arith.muli %arg0, %c2_i32 : i32
    %1 = arith.addi %0, %arg1 : i32
    %c0_i32 = arith.constant 0 : i32
    %c0_i32_0 = arith.constant 0 : i32
    %c0_i32_1 = arith.constant 0 : i32
    %c0_i32_2 = arith.constant 0 : i32
    return %1, %c0_i32, %c0_i32_0, %c0_i32_1 : i32, i32, i32, i32
  }
  func.func @transform_1(%arg0: i32, %arg1: i32) -> (i32, i32, i32) {
    %c0_i32 = arith.constant 0 : i32
    %c0_i32_0 = arith.constant 0 : i32
    %c0_i32_1 = arith.constant 0 : i32
    %c0_i32_2 = arith.constant 0 : i32
    return %c0_i32, %c0_i32_0, %c0_i32_1 : i32, i32, i32
  }
  func.func @transform_2(%arg0: i32, %arg1: i32) -> (i32, i32) {
    %c0_i32 = arith.constant 0 : i32
    %c0_i32_0 = arith.constant 0 : i32
    %c0_i32_1 = arith.constant 0 : i32
    return %c0_i32, %c0_i32_0 : i32, i32
  }
  func.func @transform_3(%arg0: i32, %arg1: i32) -> (i32, i32, i32, i32) {
    %c0_i32 = arith.constant 0 : i32
    %c0_i32_0 = arith.constant 0 : i32
    %c0_i32_1 = arith.constant 0 : i32
    return %arg0, %arg1, %c0_i32, %c0_i32_0 : i32, i32, i32, i32
  }
}

</mosaic_0001>

<llo_original>
// kernel: separable_conv2d.1
$region0: #{separable_conv2d.1}
  #allocation0 [shape = 'u32[]', space=smem, size = 0x4, offset = 0x4, fixed_abs, tag = 'smem constant byte address 0x4 - core index']
  #allocation1 [shape = 'u32[144,128]{1,0:T(1,128)}', space=vmem, size = 0x12000, scoped, tag = 'internal scratch']
  %s0 = inlined_call_operand.vmem [shape: f32[4,10,18,128], index: 0, kind: input, shape index: {}]
  %s1 = inlined_call_operand.vmem [shape: f32[3,3,128], index: 1, kind: input, shape index: {}]
  %s2 = inlined_call_operand.vmem [shape: f32[128,128], index: 2, kind: input, shape index: {}]
  %s3 = inlined_call_operand.vmem [shape: f32[2,16,16,128], index: 3, kind: output, shape index: {}]
  %s4 = sld [smem:[#allocation0]]
  $region45: #{separable_conv2d.1} parent=0
    _
  %s6 = ssub.s32 1, %s4
  %s7 = scalar_select 0, %s6, %s4
  loop: start=0, step=1, limit=6
  $region2: #{separable_conv2d.1} parent=0 // loop_pre_header
    _
  $region3: #{separable_conv2d.1} parent=0 // loop_header
    %s9 = sphi 0, %s13
    %p10 = scmp.ge.s32.totalorder %s9, 6
    %s16 = sphi 0, %s28
    %s17 = sphi 0, %s24
    %s18 = sphi 0, %s16
    %s19 = sphi 0, %s17
    %s20 = sphi 0, %s18
    %s21 = sphi 0, %s19
    %s35 = sphi 0, %s37
    %s38 = sphi 0, %s35
    %s39 = sphi 0, %s38
    %s55 = sphi 0, %s39
    %s59 = sphi 0, %s59
    %s61 = sphi 0, %s59
    %s62 = sphi 0, %s61
    %s76 = sphi 0, %s62
    %s80 = sphi 0, %s80
    %s82 = sphi 0, %s80
    %s83 = sphi 0, %s82
    %s97 = sphi 0, %s83
    %s105 = sphi 0, %s107
    %s108 = sphi 0, %s105
    %s109 = sphi 0, %s108
    %s125 = sphi 0, %s109
  $region4: #{separable_conv2d.1} parent=0 // loop_header_branch
    %12 = sbr.rel (%p10) target = $region8
  $region5: #{separable_conv2d.1} parent=0 // loop_body
    %s14 = ssub.s32 %s9, 1
    %s15 = ssub.s32 %s9, 2
    %s22 = sadd.s32 1, %s17
    %p23 = scmp.ge.s32.totalorder %s22, 2
    %s24 = scalar_select %p23, 0, %s22
    %s25 = sadd.s32 1, %s16
    %s26 = scalar_select %p23, %s25, %s16
    %p27 = scmp.ge.s32.totalorder %s26, 2
    %s28 = scalar_select %p27, 0, %s26
    %s29 = smul.u32 %s16, 2
    %s30 = sadd.s32 %s29, %s17
    %s31 = smul.u32 %s28, 2
    %s32 = sadd.s32 %s31, %s24
    %s33 = ssub.s32 %s30, %s32
    %p34 = scmp.eq.s32.totalorder %s33, 0
    %s36 = sadd.s32 %s35, 1
    %s37 = scalar_select %p34, %s35, %s36
    %p40 = pneg %p34
    %p41 = scmp.eq.s32.totalorder %s9, 3
    %p42 = por %p40, %p41
    %p43 = scmp.ne.s32.totalorder %s35, %s38
    %p44 = scmp.eq.s32.totalorder %s9, 0
    %p45 = por %p43, %p44
    %p46 = scmp.ne.s32.totalorder %s35, %s38
    %p47 = scmp.eq.s32.totalorder %s14, 3
    %p48 = por %p46, %p47
    %p49 = scmp.ne.s32.totalorder %s38, %s39
    %p50 = scmp.eq.s32.totalorder %s14, 0
    %p51 = por %p49, %p50
    %p52 = scmp.ne.s32.totalorder %s38, %s39
    %p53 = scmp.eq.s32.totalorder %s15, 3
    %p54 = por %p52, %p53
    %p56 = scmp.ne.s32.totalorder %s39, %s55
    %p57 = scmp.eq.s32.totalorder %s15, 0
    %p58 = por %p56, %p57
    %s60 = sadd.s32 %s59, 1
    %p63 = scmp.eq.s32.totalorder %s9, 3
    %p64 = scmp.ne.s32.totalorder %s59, %s61
    %p65 = scmp.eq.s32.totalorder %s9, 0
    %p66 = por %p64, %p65
    %p67 = scmp.ne.s32.totalorder %s59, %s61
    %p68 = scmp.eq.s32.totalorder %s14, 3
    %p69 = por %p67, %p68
    %p70 = scmp.ne.s32.totalorder %s61, %s62
    %p71 = scmp.eq.s32.totalorder %s14, 0
    %p72 = por %p70, %p71
    %p73 = scmp.ne.s32.totalorder %s61, %s62
    %p74 = scmp.eq.s32.totalorder %s15, 3
    %p75 = por %p73, %p74
    %p77 = scmp.ne.s32.totalorder %s62, %s76
    %p78 = scmp.eq.s32.totalorder %s15, 0
    %p79 = por %p77, %p78
    %s81 = sadd.s32 %s80, 1
    %p84 = scmp.eq.s32.totalorder %s9, 3
    %p85 = scmp.ne.s32.totalorder %s80, %s82
    %p86 = scmp.eq.s32.totalorder %s9, 0
    %p87 = por %p85, %p86
    %p88 = scmp.ne.s32.totalorder %s80, %s82
    %p89 = scmp.eq.s32.totalorder %s14, 3
    %p90 = por %p88, %p89
    %p91 = scmp.ne.s32.totalorder %s82, %s83
    %p92 = scmp.eq.s32.totalorder %s14, 0
    %p93 = por %p91, %p92
    %p94 = scmp.ne.s32.totalorder %s82, %s83
    %p95 = scmp.eq.s32.totalorder %s15, 3
    %p96 = por %p94, %p95
    %p98 = scmp.ne.s32.totalorder %s83, %s97
    %p99 = scmp.eq.s32.totalorder %s15, 0
    %p100 = por %p98, %p99
    %s101 = ssub.s32 %s16, %s28
    %s102 = ssub.s32 %s17, %s24
    %s103 = sor.u32 %s101, %s102
    %p104 = scmp.eq.s32.totalorder %s103, 0
    %s106 = sadd.s32 %s105, 1
    %s107 = scalar_select %p104, %s105, %s106
    %p110 = pneg %p104
    %p111 = scmp.eq.s32.totalorder %s9, 3
    %p112 = por %p110, %p111
    %p113 = scmp.ne.s32.totalorder %s105, %s108
    %p114 = scmp.eq.s32.totalorder %s9, 0
    %p115 = por %p113, %p114
    %p116 = scmp.ne.s32.totalorder %s105, %s108
    %p117 = scmp.eq.s32.totalorder %s14, 3
    %p118 = por %p116, %p117
    %p119 = scmp.ne.s32.totalorder %s108, %s109
    %p120 = scmp.eq.s32.totalorder %s14, 0
    %p121 = por %p119, %p120
    %p122 = scmp.ne.s32.totalorder %s108, %s109
    %p123 = scmp.eq.s32.totalorder %s15, 3
    %p124 = por %p122, %p123
    %p126 = scmp.ne.s32.totalorder %s109, %s125
    %p127 = scmp.eq.s32.totalorder %s15, 0
    %p128 = por %p126, %p127
    %p129 = scmp.le.s32.totalorder 1, %s9
    %p130 = scmp.lt.s32.totalorder %s9, 5
    %p131 = pnand %p129, %p130
    %p132 = pneg %p131
    // Predicated region
    $region9: #{separable_conv2d.1} parent=5 // pred_check
      _
    $region10: #{separable_conv2d.1} parent=5 // pred_check_branch
      %134 = sbr.rel (%p131) target = $region12
    $region11: #{separable_conv2d.1} parent=5 // pred_region
      %s135 = ssub.s32 %s9, 1
      // Predicated region
      $region13: #{separable_conv2d.1} parent=11 // pred_check
        %p136 = pneg %p72
      $region14: #{separable_conv2d.1} parent=11 // pred_check_branch
        %138 = sbr.rel (%p136) target = $region16
      $region15: #{separable_conv2d.1} parent=11 // pred_region
        _
      $region16: #{separable_conv2d.1} parent=11 // pred_fallthru
        _
      // Predicated region
      $region17: #{separable_conv2d.1} parent=11 // pred_check
        %p139 = pneg %p93
      $region18: #{separable_conv2d.1} parent=11 // pred_check_branch
        %141 = sbr.rel (%p139) target = $region20
      $region19: #{separable_conv2d.1} parent=11 // pred_region
        _
      $region20: #{separable_conv2d.1} parent=11 // pred_fallthru
        _
    $region12: #{separable_conv2d.1} parent=5 // pred_fallthru
      _
    %p142 = scmp.lt.s32.totalorder %s9, 4
    // Predicated region
    $region21: #{separable_conv2d.1} parent=5 // pred_check
      %p143 = pneg %p142
    $region22: #{separable_conv2d.1} parent=5 // pred_check_branch
      %145 = sbr.rel (%p143) target = $region24
    $region23: #{separable_conv2d.1} parent=5 // pred_region
      // Predicated region
      $region25: #{separable_conv2d.1} parent=23 // pred_check
        %p146 = pneg %p45
      $region26: #{separable_conv2d.1} parent=23 // pred_check_branch
        %148 = sbr.rel (%p146) target = $region28
      $region27: #{separable_conv2d.1} parent=23 // pred_region
        %s149 = smul.u32 %s16, 2
        %s150 = sadd.s32 %s149, %s17
        %p151 = scmp.lt.s32.totalorder %s150, 3
        %s152 = scalar_select %p151, %s150, 3
        %s153 = smul.addr %s152, 30
        %s154 = smul.addr %s153, 8
        %s155 = scalar_lea.vmem %s0, %s154
        %s156 = smul.u32 %s16, 2
        %s157 = sadd.s32 %s156, %s17
      $region28: #{separable_conv2d.1} parent=23 // pred_fallthru
        _
    $region24: #{separable_conv2d.1} parent=5 // pred_fallthru
      _
    %p158 = scmp.le.s32.totalorder 1, %s9
    %p159 = scmp.lt.s32.totalorder %s9, 5
    %p160 = pnand %p158, %p159
    %p161 = pneg %p160
    // Predicated region
    $region29: #{separable_conv2d.1} parent=5 // pred_check
      _
    $region30: #{separable_conv2d.1} parent=5 // pred_check_branch
      %163 = sbr.rel (%p160) target = $region32
    $region31: #{separable_conv2d.1} parent=5 // pred_region
      %s164 = ssub.s32 %s9, 1
      %s165 = smul.u32 %s18, 2
      %s166 = sadd.s32 %s165, %s19
      %p167 = scmp.lt.s32.totalorder %s166, 3
      %s168 = scalar_select %p167, %s166, 3
      %s169 = smul.addr %s168, 30
      %s170 = smul.addr %s169, 8
      %s171 = scalar_lea.vmem %s0, %s170
      %p172 = pneg %p51
      %p173 = pneg %p48
      %p174 = pneg %p72
      %p175 = pneg %p69
      %p176 = pneg %p93
      %p177 = pneg %p90
      %p178 = pneg %p121
      %p179 = pneg %p118
      %s180 = smul.u32 8, %s19
      %p181 = scmp.lt.s32.totalorder %s18, 1
      %s182 = scalar_select %p181, %s18, 1
      %p183 = scmp.lt.s32.totalorder %s180, 15
      %s184 = scalar_select %p183, %s180, 15
      %s185 = smul.addr %s184, 2
      %s186 = smul.addr %s182, 32
      %s187 = sadd.s32 %s185, %s186
      %s188 = smul.addr %s187, 8
      %s189 = scalar_lea.vmem %s3, %s188
      %s190 = smul.u32 %s18, 2
      %s191 = sadd.s32 %s190, %s19
      %p192 = scmp.lt.s32.totalorder %s191, 3
      %s193 = scalar_select %p192, %s191, 3
      %s194 = smul.addr %s193, 30
      %s195 = smul.addr %s194, 8
      %s196 = scalar_lea.vmem %s0, %s195
      %s197 = smul.u32 %s18, 2
      %s198 = sadd.s32 %s197, %s19
      %s199 = smul.u32 8, %s19
      %p200 = scmp.lt.s32.totalorder %s18, 1
      %s201 = scalar_select %p200, %s18, 1
      %p202 = scmp.lt.s32.totalorder %s199, 15
      %s203 = scalar_select %p202, %s199, 15
      %s204 = smul.addr %s203, 2
      %s205 = smul.addr %s201, 32
      %s206 = sadd.s32 %s204, %s205
      %s207 = smul.addr %s206, 8
      %s208 = scalar_lea.vmem %s3, %s207
      %s209 = smul.u32 8, %s19
      %v211 = vld [vmem:[%s196] sm:$0xff]
      %v212 = vld [vmem:[%s196 + $0x8] sm:$0xff]
      %v213 = vld [vmem:[%s196 + $0x18] sm:$0xff]
      %v214 = vld [vmem:[%s196 + $0x20] sm:$0xff]
      %v215 = vld [vmem:[%s196 + $0x30] sm:$0xff]
      %v216 = vld [vmem:[%s196 + $0x38] sm:$0xff]
      %v217 = vld [vmem:[%s196 + $0x48] sm:$0xff]
      %v218 = vld [vmem:[%s196 + $0x50] sm:$0xff]
      %v219 = vld [vmem:[%s196 + $0x60] sm:$0xff]
      %v220 = vld [vmem:[%s196 + $0x68] sm:$0xff]
      %v221 = vld [vmem:[%s196 + $0x78] sm:$0xff]
      %v222 = vld [vmem:[%s196 + $0x80] sm:$0xff]
      %v223 = vld [vmem:[%s196 + $0x90] sm:$0xff]
      %v224 = vld [vmem:[%s196 + $0x98] sm:$0xff]
      %v225 = vld [vmem:[%s196 + $0xa8] sm:$0xff]
      %v226 = vld [vmem:[%s196 + $0xb0] sm:$0xff]
      %v227 = vld [vmem:[%s1] sm:$0x1]
      %v228 = vlaneseq
      %v229 = vshrl.u32 %v228, 7
      %v230 = vsub.s32 0, %v229
      %v231 = vrot.slane %v227, %v230
      %v232 = vmul.f32 %v211, %v231
      %v233 = vmul.f32 %v212, %v231
      %v234 = vmul.f32 %v213, %v231
      %v235 = vmul.f32 %v214, %v231
      %v236 = vmul.f32 %v215, %v231
      %v237 = vmul.f32 %v216, %v231
      %v238 = vmul.f32 %v217, %v231
      %v239 = vmul.f32 %v218, %v231
      %v240 = vmul.f32 %v219, %v231
      %v241 = vmul.f32 %v220, %v231
      %v242 = vmul.f32 %v221, %v231
      %v243 = vmul.f32 %v222, %v231
      %v244 = vmul.f32 %v223, %v231
      %v245 = vmul.f32 %v224, %v231
      %v246 = vmul.f32 %v225, %v231
      %v247 = vmul.f32 %v226, %v231
      %v248 = vadd.f32 %v232, 0.0
      %v249 = vadd.f32 %v233, 0.0
      %v250 = vadd.f32 %v234, 0.0
      %v251 = vadd.f32 %v235, 0.0
      %v252 = vadd.f32 %v236, 0.0
      %v253 = vadd.f32 %v237, 0.0
      %v254 = vadd.f32 %v238, 0.0
      %v255 = vadd.f32 %v239, 0.0
      %v256 = vadd.f32 %v240, 0.0
      %v257 = vadd.f32 %v241, 0.0
      %v258 = vadd.f32 %v242, 0.0
      %v259 = vadd.f32 %v243, 0.0
      %v260 = vadd.f32 %v244, 0.0
      %v261 = vadd.f32 %v245, 0.0
      %v262 = vadd.f32 %v246, 0.0
      %v263 = vadd.f32 %v247, 0.0
      %v264 = vld [vmem:[%s196 + $0x1] sm:$0xff]
      %v265 = vld [vmem:[%s196 + $0x9] sm:$0xff]
      %v266 = vld [vmem:[%s196 + $0x19] sm:$0xff]
      %v267 = vld [vmem:[%s196 + $0x21] sm:$0xff]
      %v268 = vld [vmem:[%s196 + $0x31] sm:$0xff]
      %v269 = vld [vmem:[%s196 + $0x39] sm:$0xff]
      %v270 = vld [vmem:[%s196 + $0x49] sm:$0xff]
      %v271 = vld [vmem:[%s196 + $0x51] sm:$0xff]
      %v272 = vld [vmem:[%s196 + $0x61] sm:$0xff]
      %v273 = vld [vmem:[%s196 + $0x69] sm:$0xff]
      %v274 = vld [vmem:[%s196 + $0x79] sm:$0xff]
      %v275 = vld [vmem:[%s196 + $0x81] sm:$0xff]
      %v276 = vld [vmem:[%s196 + $0x91] sm:$0xff]
      %v277 = vld [vmem:[%s196 + $0x99] sm:$0xff]
      %v278 = vld [vmem:[%s196 + $0xa9] sm:$0xff]
      %v279 = vld [vmem:[%s196 + $0xb1] sm:$0xff]
      %v280 = vld [vmem:[%s1 + $0x1] sm:$0x1]
      %v281 = vlaneseq
      %v282 = vshrl.u32 %v281, 7
      %v283 = vsub.s32 0, %v282
      %v284 = vrot.slane %v280, %v283
      %v285 = vmul.f32 %v264, %v284
      %v286 = vmul.f32 %v265, %v284
      %v287 = vmul.f32 %v266, %v284
      %v288 = vmul.f32 %v267, %v284
      %v289 = vmul.f32 %v268, %v284
      %v290 = vmul.f32 %v269, %v284
      %v291 = vmul.f32 %v270, %v284
      %v292 = vmul.f32 %v271, %v284
      %v293 = vmul.f32 %v272, %v284
      %v294 = vmul.f32 %v273, %v284
      %v295 = vmul.f32 %v274, %v284
      %v296 = vmul.f32 %v275, %v284
      %v297 = vmul.f32 %v276, %v284
      %v298 = vmul.f32 %v277, %v284
      %v299 = vmul.f32 %v278, %v284
      %v300 = vmul.f32 %v279, %v284
      %v301 = vadd.f32 %v248, %v285
      %v302 = vadd.f32 %v249, %v286
      %v303 = vadd.f32 %v250, %v287
      %v304 = vadd.f32 %v251, %v288
      %v305 = vadd.f32 %v252, %v289
      %v306 = vadd.f32 %v253, %v290
      %v307 = vadd.f32 %v254, %v291
      %v308 = vadd.f32 %v255, %v292
      %v309 = vadd.f32 %v256, %v293
      %v310 = vadd.f32 %v257, %v294
      %v311 = vadd.f32 %v258, %v295
      %v312 = vadd.f32 %v259, %v296
      %v313 = vadd.f32 %v260, %v297
      %v314 = vadd.f32 %v261, %v298
      %v315 = vadd.f32 %v262, %v299
      %v316 = vadd.f32 %v263, %v300
      %v317 = vld [vmem:[%s196 + $0x2] sm:$0xff]
      %v318 = vld [vmem:[%s196 + $0xa] sm:$0xff]
      %v319 = vld [vmem:[%s196 + $0x1a] sm:$0xff]
      %v320 = vld [vmem:[%s196 + $0x22] sm:$0xff]
      %v321 = vld [vmem:[%s196 + $0x32] sm:$0xff]
      %v322 = vld [vmem:[%s196 + $0x3a] sm:$0xff]
      %v323 = vld [vmem:[%s196 + $0x4a] sm:$0xff]
      %v324 = vld [vmem:[%s196 + $0x52] sm:$0xff]
      %v325 = vld [vmem:[%s196 + $0x62] sm:$0xff]
      %v326 = vld [vmem:[%s196 + $0x6a] sm:$0xff]
      %v327 = vld [vmem:[%s196 + $0x7a] sm:$0xff]
      %v328 = vld [vmem:[%s196 + $0x82] sm:$0xff]
      %v329 = vld [vmem:[%s196 + $0x92] sm:$0xff]
      %v330 = vld [vmem:[%s196 + $0x9a] sm:$0xff]
      %v331 = vld [vmem:[%s196 + $0xaa] sm:$0xff]
      %v332 = vld [vmem:[%s196 + $0xb2] sm:$0xff]
      %v333 = vld [vmem:[%s1 + $0x2] sm:$0x1]
      %v334 = vlaneseq
      %v335 = vshrl.u32 %v334, 7
      %v336 = vsub.s32 0, %v335
      %v337 = vrot.slane %v333, %v336
      %v338 = vmul.f32 %v317, %v337
      %v339 = vmul.f32 %v318, %v337
      %v340 = vmul.f32 %v319, %v337
      %v341 = vmul.f32 %v320, %v337
      %v342 = vmul.f32 %v321, %v337
      %v343 = vmul.f32 %v322, %v337
      %v344 = vmul.f32 %v323, %v337
      %v345 = vmul.f32 %v324, %v337
      %v346 = vmul.f32 %v325, %v337
      %v347 = vmul.f32 %v326, %v337
      %v348 = vmul.f32 %v327, %v337
      %v349 = vmul.f32 %v328, %v337
      %v350 = vmul.f32 %v329, %v337
      %v351 = vmul.f32 %v330, %v337
      %v352 = vmul.f32 %v331, %v337
      %v353 = vmul.f32 %v332, %v337
      %v354 = vadd.f32 %v301, %v338
      %v355 = vadd.f32 %v302, %v339
      %v356 = vadd.f32 %v303, %v340
      %v357 = vadd.f32 %v304, %v341
      %v358 = vadd.f32 %v305, %v342
      %v359 = vadd.f32 %v306, %v343
      %v360 = vadd.f32 %v307, %v344
      %v361 = vadd.f32 %v308, %v345
      %v362 = vadd.f32 %v309, %v346
      %v363 = vadd.f32 %v310, %v347
      %v364 = vadd.f32 %v311, %v348
      %v365 = vadd.f32 %v312, %v349
      %v366 = vadd.f32 %v313, %v350
      %v367 = vadd.f32 %v314, %v351
      %v368 = vadd.f32 %v315, %v352
      %v369 = vadd.f32 %v316, %v353
      %s370 = scalar_lea.vmem %s196, 24
      %v371 = vld [vmem:[%s370] sm:$0xff]
      %v372 = vld [vmem:[%s370 + $0x8] sm:$0xff]
      %v373 = vld [vmem:[%s370 + $0x18] sm:$0xff]
      %v374 = vld [vmem:[%s370 + $0x20] sm:$0xff]
      %v375 = vld [vmem:[%s370 + $0x30] sm:$0xff]
      %v376 = vld [vmem:[%s370 + $0x38] sm:$0xff]
      %v377 = vld [vmem:[%s370 + $0x48] sm:$0xff]
      %v378 = vld [vmem:[%s370 + $0x50] sm:$0xff]
      %v379 = vld [vmem:[%s370 + $0x60] sm:$0xff]
      %v380 = vld [vmem:[%s370 + $0x68] sm:$0xff]
      %v381 = vld [vmem:[%s370 + $0x78] sm:$0xff]
      %v382 = vld [vmem:[%s370 + $0x80] sm:$0xff]
      %v383 = vld [vmem:[%s370 + $0x90] sm:$0xff]
      %v384 = vld [vmem:[%s370 + $0x98] sm:$0xff]
      %v385 = vld [vmem:[%s370 + $0xa8] sm:$0xff]
      %v386 = vld [vmem:[%s370 + $0xb0] sm:$0xff]
      %s387 = scalar_lea.vmem %s1, 4
      %v388 = vld [vmem:[%s387] sm:$0x1]
      %v389 = vlaneseq
      %v390 = vshrl.u32 %v389, 7
      %v391 = vsub.s32 0, %v390
      %v392 = vrot.slane %v388, %v391
      %v393 = vmul.f32 %v371, %v392
      %v394 = vmul.f32 %v372, %v392
      %v395 = vmul.f32 %v373, %v392
      %v396 = vmul.f32 %v374, %v392
      %v397 = vmul.f32 %v375, %v392
      %v398 = vmul.f32 %v376, %v392
      %v399 = vmul.f32 %v377, %v392
      %v400 = vmul.f32 %v378, %v392
      %v401 = vmul.f32 %v379, %v392
      %v402 = vmul.f32 %v380, %v392
      %v403 = vmul.f32 %v381, %v392
      %v404 = vmul.f32 %v382, %v392
      %v405 = vmul.f32 %v383, %v392
      %v406 = vmul.f32 %v384, %v392
      %v407 = vmul.f32 %v385, %v392
      %v408 = vmul.f32 %v386, %v392
      %v409 = vadd.f32 %v354, %v393
      %v410 = vadd.f32 %v355, %v394
      %v411 = vadd.f32 %v356, %v395
      %v412 = vadd.f32 %v357, %v396
      %v413 = vadd.f32 %v358, %v397
      %v414 = vadd.f32 %v359, %v398
      %v415 = vadd.f32 %v360, %v399
      %v416 = vadd.f32 %v361, %v400
      %v417 = vadd.f32 %v362, %v401
      %v418 = vadd.f32 %v363, %v402
      %v419 = vadd.f32 %v364, %v403
      %v420 = vadd.f32 %v365, %v404
      %v421 = vadd.f32 %v366, %v405
      %v422 = vadd.f32 %v367, %v406
      %v423 = vadd.f32 %v368, %v407
      %v424 = vadd.f32 %v369, %v408
      %v425 = vld [vmem:[%s370 + $0x1] sm:$0xff]
      %v426 = vld [vmem:[%s370 + $0x9] sm:$0xff]
      %v427 = vld [vmem:[%s370 + $0x19] sm:$0xff]
      %v428 = vld [vmem:[%s370 + $0x21] sm:$0xff]
      %v429 = vld [vmem:[%s370 + $0x31] sm:$0xff]
      %v430 = vld [vmem:[%s370 + $0x39] sm:$0xff]
      %v431 = vld [vmem:[%s370 + $0x49] sm:$0xff]
      %v432 = vld [vmem:[%s370 + $0x51] sm:$0xff]
      %v433 = vld [vmem:[%s370 + $0x61] sm:$0xff]
      %v434 = vld [vmem:[%s370 + $0x69] sm:$0xff]
      %v435 = vld [vmem:[%s370 + $0x79] sm:$0xff]
      %v436 = vld [vmem:[%s370 + $0x81] sm:$0xff]
      %v437 = vld [vmem:[%s370 + $0x91] sm:$0xff]
      %v438 = vld [vmem:[%s370 + $0x99] sm:$0xff]
      %v439 = vld [vmem:[%s370 + $0xa9] sm:$0xff]
      %v440 = vld [vmem:[%s370 + $0xb1] sm:$0xff]
      %v441 = vld [vmem:[%s387 + $0x1] sm:$0x1]
      %v442 = vlaneseq
      %v443 = vshrl.u32 %v442, 7
      %v444 = vsub.s32 0, %v443
      %v445 = vrot.slane %v441, %v444
      %v446 = vmul.f32 %v425, %v445
      %v447 = vmul.f32 %v426, %v445
      %v448 = vmul.f32 %v427, %v445
      %v449 = vmul.f32 %v428, %v445
      %v450 = vmul.f32 %v429, %v445
      %v451 = vmul.f32 %v430, %v445
      %v452 = vmul.f32 %v431, %v445
      %v453 = vmul.f32 %v432, %v445
      %v454 = vmul.f32 %v433, %v445
      %v455 = vmul.f32 %v434, %v445
      %v456 = vmul.f32 %v435, %v445
      %v457 = vmul.f32 %v436, %v445
      %v458 = vmul.f32 %v437, %v445
      %v459 = vmul.f32 %v438, %v445
      %v460 = vmul.f32 %v439, %v445
      %v461 = vmul.f32 %v440, %v445
      %v462 = vadd.f32 %v409, %v446
      %v463 = vadd.f32 %v410, %v447
      %v464 = vadd.f32 %v411, %v448
      %v465 = vadd.f32 %v412, %v449
      %v466 = vadd.f32 %v413, %v450
      %v467 = vadd.f32 %v414, %v451
      %v468 = vadd.f32 %v415, %v452
      %v469 = vadd.f32 %v416, %v453
      %v470 = vadd.f32 %v417, %v454
      %v471 = vadd.f32 %v418, %v455
      %v472 = vadd.f32 %v419, %v456
      %v473 = vadd.f32 %v420, %v457
      %v474 = vadd.f32 %v421, %v458
      %v475 = vadd.f32 %v422, %v459
      %v476 = vadd.f32 %v423, %v460
      %v477 = vadd.f32 %v424, %v461
      %v478 = vld [vmem:[%s370 + $0x2] sm:$0xff]
      %v479 = vld [vmem:[%s370 + $0xa] sm:$0xff]
      %v480 = vld [vmem:[%s370 + $0x1a] sm:$0xff]
      %v481 = vld [vmem:[%s370 + $0x22] sm:$0xff]
      %v482 = vld [vmem:[%s370 + $0x32] sm:$0xff]
      %v483 = vld [vmem:[%s370 + $0x3a] sm:$0xff]
      %v484 = vld [vmem:[%s370 + $0x4a] sm:$0xff]
      %v485 = vld [vmem:[%s370 + $0x52] sm:$0xff]
      %v486 = vld [vmem:[%s370 + $0x62] sm:$0xff]
      %v487 = vld [vmem:[%s370 + $0x6a] sm:$0xff]
      %v488 = vld [vmem:[%s370 + $0x7a] sm:$0xff]
      %v489 = vld [vmem:[%s370 + $0x82] sm:$0xff]
      %v490 = vld [vmem:[%s370 + $0x92] sm:$0xff]
      %v491 = vld [vmem:[%s370 + $0x9a] sm:$0xff]
      %v492 = vld [vmem:[%s370 + $0xaa] sm:$0xff]
      %v493 = vld [vmem:[%s370 + $0xb2] sm:$0xff]
      %v494 = vld [vmem:[%s387 + $0x2] sm:$0x1]
      %v495 = vlaneseq
      %v496 = vshrl.u32 %v495, 7
      %v497 = vsub.s32 0, %v496
      %v498 = vrot.slane %v494, %v497
      %v499 = vmul.f32 %v478, %v498
      %v500 = vmul.f32 %v479, %v498
      %v501 = vmul.f32 %v480, %v498
      %v502 = vmul.f32 %v481, %v498
      %v503 = vmul.f32 %v482, %v498
      %v504 = vmul.f32 %v483, %v498
      %v505 = vmul.f32 %v484, %v498
      %v506 = vmul.f32 %v485, %v498
      %v507 = vmul.f32 %v486, %v498
      %v508 = vmul.f32 %v487, %v498
      %v509 = vmul.f32 %v488, %v498
      %v510 = vmul.f32 %v489, %v498
      %v511 = vmul.f32 %v490, %v498
      %v512 = vmul.f32 %v491, %v498
      %v513 = vmul.f32 %v492, %v498
      %v514 = vmul.f32 %v493, %v498
      %v515 = vadd.f32 %v462, %v499
      %v516 = vadd.f32 %v463, %v500
      %v517 = vadd.f32 %v464, %v501
      %v518 = vadd.f32 %v465, %v502
      %v519 = vadd.f32 %v466, %v503
      %v520 = vadd.f32 %v467, %v504
      %v521 = vadd.f32 %v468, %v505
      %v522 = vadd.f32 %v469, %v506
      %v523 = vadd.f32 %v470, %v507
      %v524 = vadd.f32 %v471, %v508
      %v525 = vadd.f32 %v472, %v509
      %v526 = vadd.f32 %v473, %v510
      %v527 = vadd.f32 %v474, %v511
      %v528 = vadd.f32 %v475, %v512
      %v529 = vadd.f32 %v476, %v513
      %v530 = vadd.f32 %v477, %v514
      %s531 = scalar_lea.vmem %s196, 48
      %v532 = vld [vmem:[%s531] sm:$0xff]
      %v533 = vld [vmem:[%s531 + $0x8] sm:$0xff]
      %v534 = vld [vmem:[%s531 + $0x18] sm:$0xff]
      %v535 = vld [vmem:[%s531 + $0x20] sm:$0xff]
      %v536 = vld [vmem:[%s531 + $0x30] sm:$0xff]
      %v537 = vld [vmem:[%s531 + $0x38] sm:$0xff]
      %v538 = vld [vmem:[%s531 + $0x48] sm:$0xff]
      %v539 = vld [vmem:[%s531 + $0x50] sm:$0xff]
      %v540 = vld [vmem:[%s531 + $0x60] sm:$0xff]
      %v541 = vld [vmem:[%s531 + $0x68] sm:$0xff]
      %v542 = vld [vmem:[%s531 + $0x78] sm:$0xff]
      %v543 = vld [vmem:[%s531 + $0x80] sm:$0xff]
      %v544 = vld [vmem:[%s531 + $0x90] sm:$0xff]
      %v545 = vld [vmem:[%s531 + $0x98] sm:$0xff]
      %v546 = vld [vmem:[%s531 + $0xa8] sm:$0xff]
      %v547 = vld [vmem:[%s531 + $0xb0] sm:$0xff]
      %s548 = scalar_lea.vmem %s1, 8
      %v549 = vld [vmem:[%s548] sm:$0x1]
      %v550 = vlaneseq
      %v551 = vshrl.u32 %v550, 7
      %v552 = vsub.s32 0, %v551
      %v553 = vrot.slane %v549, %v552
      %v554 = vmul.f32 %v532, %v553
      %v555 = vmul.f32 %v533, %v553
      %v556 = vmul.f32 %v534, %v553
      %v557 = vmul.f32 %v535, %v553
      %v558 = vmul.f32 %v536, %v553
      %v559 = vmul.f32 %v537, %v553
      %v560 = vmul.f32 %v538, %v553
      %v561 = vmul.f32 %v539, %v553
      %v562 = vmul.f32 %v540, %v553
      %v563 = vmul.f32 %v541, %v553
      %v564 = vmul.f32 %v542, %v553
      %v565 = vmul.f32 %v543, %v553
      %v566 = vmul.f32 %v544, %v553
      %v567 = vmul.f32 %v545, %v553
      %v568 = vmul.f32 %v546, %v553
      %v569 = vmul.f32 %v547, %v553
      %v570 = vadd.f32 %v515, %v554
      %v571 = vadd.f32 %v516, %v555
      %v572 = vadd.f32 %v517, %v556
      %v573 = vadd.f32 %v518, %v557
      %v574 = vadd.f32 %v519, %v558
      %v575 = vadd.f32 %v520, %v559
      %v576 = vadd.f32 %v521, %v560
      %v577 = vadd.f32 %v522, %v561
      %v578 = vadd.f32 %v523, %v562
      %v579 = vadd.f32 %v524, %v563
      %v580 = vadd.f32 %v525, %v564
      %v581 = vadd.f32 %v526, %v565
      %v582 = vadd.f32 %v527, %v566
      %v583 = vadd.f32 %v528, %v567
      %v584 = vadd.f32 %v529, %v568
      %v585 = vadd.f32 %v530, %v569
      %v586 = vld [vmem:[%s531 + $0x1] sm:$0xff]
      %v587 = vld [vmem:[%s531 + $0x9] sm:$0xff]
      %v588 = vld [vmem:[%s531 + $0x19] sm:$0xff]
      %v589 = vld [vmem:[%s531 + $0x21] sm:$0xff]
      %v590 = vld [vmem:[%s531 + $0x31] sm:$0xff]
      %v591 = vld [vmem:[%s531 + $0x39] sm:$0xff]
      %v592 = vld [vmem:[%s531 + $0x49] sm:$0xff]
      %v593 = vld [vmem:[%s531 + $0x51] sm:$0xff]
      %v594 = vld [vmem:[%s531 + $0x61] sm:$0xff]
      %v595 = vld [vmem:[%s531 + $0x69] sm:$0xff]
      %v596 = vld [vmem:[%s531 + $0x79] sm:$0xff]
      %v597 = vld [vmem:[%s531 + $0x81] sm:$0xff]
      %v598 = vld [vmem:[%s531 + $0x91] sm:$0xff]
      %v599 = vld [vmem:[%s531 + $0x99] sm:$0xff]
      %v600 = vld [vmem:[%s531 + $0xa9] sm:$0xff]
      %v601 = vld [vmem:[%s531 + $0xb1] sm:$0xff]
      %v602 = vld [vmem:[%s548 + $0x1] sm:$0x1]
      %v603 = vlaneseq
      %v604 = vshrl.u32 %v603, 7
      %v605 = vsub.s32 0, %v604
      %v606 = vrot.slane %v602, %v605
      %v607 = vmul.f32 %v586, %v606
      %v608 = vmul.f32 %v587, %v606
      %v609 = vmul.f32 %v588, %v606
      %v610 = vmul.f32 %v589, %v606
      %v611 = vmul.f32 %v590, %v606
      %v612 = vmul.f32 %v591, %v606
      %v613 = vmul.f32 %v592, %v606
      %v614 = vmul.f32 %v593, %v606
      %v615 = vmul.f32 %v594, %v606
      %v616 = vmul.f32 %v595, %v606
      %v617 = vmul.f32 %v596, %v606
      %v618 = vmul.f32 %v597, %v606
      %v619 = vmul.f32 %v598, %v606
      %v620 = vmul.f32 %v599, %v606
      %v621 = vmul.f32 %v600, %v606
      %v622 = vmul.f32 %v601, %v606
      %v623 = vadd.f32 %v570, %v607
      %v624 = vadd.f32 %v571, %v608
      %v625 = vadd.f32 %v572, %v609
      %v626 = vadd.f32 %v573, %v610
      %v627 = vadd.f32 %v574, %v611
      %v628 = vadd.f32 %v575, %v612
      %v629 = vadd.f32 %v576, %v613
      %v630 = vadd.f32 %v577, %v614
      %v631 = vadd.f32 %v578, %v615
      %v632 = vadd.f32 %v579, %v616
      %v633 = vadd.f32 %v580, %v617
      %v634 = vadd.f32 %v581, %v618
      %v635 = vadd.f32 %v582, %v619
      %v636 = vadd.f32 %v583, %v620
      %v637 = vadd.f32 %v584, %v621
      %v638 = vadd.f32 %v585, %v622
      %v639 = vld [vmem:[%s531 + $0x2] sm:$0xff]
      %v640 = vld [vmem:[%s531 + $0xa] sm:$0xff]
      %v641 = vld [vmem:[%s531 + $0x1a] sm:$0xff]
      %v642 = vld [vmem:[%s531 + $0x22] sm:$0xff]
      %v643 = vld [vmem:[%s531 + $0x32] sm:$0xff]
      %v644 = vld [vmem:[%s531 + $0x3a] sm:$0xff]
      %v645 = vld [vmem:[%s531 + $0x4a] sm:$0xff]
      %v646 = vld [vmem:[%s531 + $0x52] sm:$0xff]
      %v647 = vld [vmem:[%s531 + $0x62] sm:$0xff]
      %v648 = vld [vmem:[%s531 + $0x6a] sm:$0xff]
      %v649 = vld [vmem:[%s531 + $0x7a] sm:$0xff]
      %v650 = vld [vmem:[%s531 + $0x82] sm:$0xff]
      %v651 = vld [vmem:[%s531 + $0x92] sm:$0xff]
      %v652 = vld [vmem:[%s531 + $0x9a] sm:$0xff]
      %v653 = vld [vmem:[%s531 + $0xaa] sm:$0xff]
      %v654 = vld [vmem:[%s531 + $0xb2] sm:$0xff]
      %v655 = vld [vmem:[%s548 + $0x2] sm:$0x1]
      %v656 = vlaneseq
      %v657 = vshrl.u32 %v656, 7
      %v658 = vsub.s32 0, %v657
      %v659 = vrot.slane %v655, %v658
      %v660 = vmul.f32 %v639, %v659
      %v661 = vmul.f32 %v640, %v659
      %v662 = vmul.f32 %v641, %v659
      %v663 = vmul.f32 %v642, %v659
      %v664 = vmul.f32 %v643, %v659
      %v665 = vmul.f32 %v644, %v659
      %v666 = vmul.f32 %v645, %v659
      %v667 = vmul.f32 %v646, %v659
      %v668 = vmul.f32 %v647, %v659
      %v669 = vmul.f32 %v648, %v659
      %v670 = vmul.f32 %v649, %v659
      %v671 = vmul.f32 %v650, %v659
      %v672 = vmul.f32 %v651, %v659
      %v673 = vmul.f32 %v652, %v659
      %v674 = vmul.f32 %v653, %v659
      %v675 = vmul.f32 %v654, %v659
      %v676 = vadd.f32 %v623, %v660
      %v677 = vadd.f32 %v624, %v661
      %v678 = vadd.f32 %v625, %v662
      %v679 = vadd.f32 %v626, %v663
      %v680 = vadd.f32 %v627, %v664
      %v681 = vadd.f32 %v628, %v665
      %v682 = vadd.f32 %v629, %v666
      %v683 = vadd.f32 %v630, %v667
      %v684 = vadd.f32 %v631, %v668
      %v685 = vadd.f32 %v632, %v669
      %v686 = vadd.f32 %v633, %v670
      %v687 = vadd.f32 %v634, %v671
      %v688 = vadd.f32 %v635, %v672
      %v689 = vadd.f32 %v636, %v673
      %v690 = vadd.f32 %v637, %v674
      %v691 = vadd.f32 %v638, %v675
      %v692 = vpack.c.bf16 %v677, %v676
      %v693 = vpack.c.bf16 %v679, %v678
      %v694 = vpack.c.bf16 %v681, %v680
      %v695 = vpack.c.bf16 %v683, %v682
      %v696 = vpack.c.bf16 %v685, %v684
      %v697 = vpack.c.bf16 %v687, %v686
      %v698 = vpack.c.bf16 %v689, %v688
      %v699 = vpack.c.bf16 %v691, %v690
      %v700 = vld [vmem:[%s2] sm:$0xff]
      %v701 = vld [vmem:[%s2 + $0x8] sm:$0xff]
      %v702 = vld [vmem:[%s2 + $0x10] sm:$0xff]
      %v703 = vld [vmem:[%s2 + $0x18] sm:$0xff]
      %v704 = vld [vmem:[%s2 + $0x20] sm:$0xff]
      %v705 = vld [vmem:[%s2 + $0x28] sm:$0xff]
      %v706 = vld [vmem:[%s2 + $0x30] sm:$0xff]
      %v707 = vld [vmem:[%s2 + $0x38] sm:$0xff]
      %v708 = vld [vmem:[%s2 + $0x40] sm:$0xff]
      %v709 = vld [vmem:[%s2 + $0x48] sm:$0xff]
      %v710 = vld [vmem:[%s2 + $0x50] sm:$0xff]
      %v711 = vld [vmem:[%s2 + $0x58] sm:$0xff]
      %v712 = vld [vmem:[%s2 + $0x60] sm:$0xff]
      %v713 = vld [vmem:[%s2 + $0x68] sm:$0xff]
      %v714 = vld [vmem:[%s2 + $0x70] sm:$0xff]
      %v715 = vld [vmem:[%s2 + $0x78] sm:$0xff]
      %v716 = vpack.c.bf16 %v701, %v700
      %v717 = vpack.c.bf16 %v703, %v702
      %v718 = vpack.c.bf16 %v705, %v704
      %v719 = vpack.c.bf16 %v707, %v706
      %v720 = vpack.c.bf16 %v709, %v708
      %v721 = vpack.c.bf16 %v711, %v710
      %v722 = vpack.c.bf16 %v713, %v712
      %v723 = vpack.c.bf16 %v715, %v714
      %724 = vmatprep.subr.bf16.mxu0 0
      %725 = vmatpush1.bf16.msra.mxu0 %v716
      %726 = vmatprep.subr.bf16.mxu0 0
      %727 = vmatpush1.bf16.msra.mxu0 %v717
      %728 = vmatprep.subr.bf16.mxu0 0
      %729 = vmatpush1.bf16.msra.mxu0 %v718
      %730 = vmatprep.subr.bf16.mxu0 0
      %731 = vmatpush1.bf16.msra.mxu0 %v719
      %732 = vmatprep.subr.bf16.mxu0 0
      %733 = vmatpush1.bf16.msra.mxu0 %v720
      %734 = vmatprep.subr.bf16.mxu0 0
      %735 = vmatpush1.bf16.msra.mxu0 %v721
      %736 = vmatprep.subr.bf16.mxu0 0
      %737 = vmatpush1.bf16.msra.mxu0 %v722
      %738 = vmatprep.subr.bf16.mxu0 0
      %739 = vmatpush1.bf16.msra.mxu0 %v723
      %740 = vmatprep.subr.bf16.mxu0 0
      %741 = vmatpush1.bf16.msra.mxu0 0
      %742 = vmatprep.subr.bf16.mxu0 0
      %743 = vmatpush1.bf16.msra.mxu0 0
      %744 = vmatprep.subr.bf16.mxu0 0
      %745 = vmatpush1.bf16.msra.mxu0 0
      %746 = vmatprep.subr.bf16.mxu0 0
      %747 = vmatpush1.bf16.msra.mxu0 0
      %748 = vmatprep.subr.bf16.mxu0 0
      %749 = vmatpush1.bf16.msra.mxu0 0
      %750 = vmatprep.subr.bf16.mxu0 0
      %751 = vmatpush1.bf16.msra.mxu0 0
      %752 = vmatprep.subr.bf16.mxu0 0
      %753 = vmatpush1.bf16.msra.mxu0 0
      %754 = vmatprep.subr.bf16.mxu0 0
      %755 = vmatpush1.bf16.msra.mxu0 0
      %756 = vmatprep.mubr.bf16.mxu0 0
      %757 = vmatmul.mubr.bf16.gmra.mrb[0].mxu0 %v692
      %v758 = vpop.f32.mrb[0].mxu0
      %v759 = vadd.f32 0.0, %v758
      %v760 = vpop.f32.mrb[0].mxu0
      %v761 = vpop.f32.mrb[0].mxu0
      %v762 = vadd.f32 0.0, %v761
      %v763 = vpop.f32.mrb[0].mxu0
      %764 = vmatprep.mubr.bf16.mxu0 0
      %765 = vmatmul.mubr.bf16.gmra.mrb[0].mxu0 %v693
      %v766 = vpop.f32.mrb[0].mxu0
      %v767 = vadd.f32 0.0, %v766
      %v768 = vpop.f32.mrb[0].mxu0
      %v769 = vpop.f32.mrb[0].mxu0
      %v770 = vadd.f32 0.0, %v769
      %v771 = vpop.f32.mrb[0].mxu0
      %772 = vmatprep.mubr.bf16.mxu0 0
      %773 = vmatmul.mubr.bf16.gmra.mrb[0].mxu0 %v694
      %v774 = vpop.f32.mrb[0].mxu0
      %v775 = vadd.f32 0.0, %v774
      %v776 = vpop.f32.mrb[0].mxu0
      %v777 = vpop.f32.mrb[0].mxu0
      %v778 = vadd.f32 0.0, %v777
      %v779 = vpop.f32.mrb[0].mxu0
      %780 = vmatprep.mubr.bf16.mxu0 0
      %781 = vmatmul.mubr.bf16.gmra.mrb[0].mxu0 %v695
      %v782 = vpop.f32.mrb[0].mxu0
      %v783 = vadd.f32 0.0, %v782
      %v784 = vpop.f32.mrb[0].mxu0
      %v785 = vpop.f32.mrb[0].mxu0
      %v786 = vadd.f32 0.0, %v785
      %v787 = vpop.f32.mrb[0].mxu0
      %788 = vmatprep.mubr.bf16.mxu0 0
      %789 = vmatmul.mubr.bf16.gmra.mrb[0].mxu0 %v696
      %v790 = vpop.f32.mrb[0].mxu0
      %v791 = vadd.f32 0.0, %v790
      %v792 = vpop.f32.mrb[0].mxu0
      %v793 = vpop.f32.mrb[0].mxu0
      %v794 = vadd.f32 0.0, %v793
      %v795 = vpop.f32.mrb[0].mxu0
      %796 = vmatprep.mubr.bf16.mxu0 0
      %797 = vmatmul.mubr.bf16.gmra.mrb[0].mxu0 %v697
      %v798 = vpop.f32.mrb[0].mxu0
      %v799 = vadd.f32 0.0, %v798
      %v800 = vpop.f32.mrb[0].mxu0
      %v801 = vpop.f32.mrb[0].mxu0
      %v802 = vadd.f32 0.0, %v801
      %v803 = vpop.f32.mrb[0].mxu0
      %804 = vmatprep.mubr.bf16.mxu0 0
      %805 = vmatmul.mubr.bf16.gmra.mrb[0].mxu0 %v698
      %v806 = vpop.f32.mrb[0].mxu0
      %v807 = vadd.f32 0.0, %v806
      %v808 = vpop.f32.mrb[0].mxu0
      %v809 = vpop.f32.mrb[0].mxu0
      %v810 = vadd.f32 0.0, %v809
      %v811 = vpop.f32.mrb[0].mxu0
      %812 = vmatprep.mubr.bf16.mxu0 0
      %813 = vmatmul.mubr.bf16.gmra.mrb[0].mxu0 %v699
      %v814 = vpop.f32.mrb[0].mxu0
      %v815 = vadd.f32 0.0, %v814
      %v816 = vpop.f32.mrb[0].mxu0
      %v817 = vpop.f32.mrb[0].mxu0
      %v818 = vadd.f32 0.0, %v817
      %v819 = vpop.f32.mrb[0].mxu0
      %820 = vdwg.mxu0
      %821 = vst [vmem:[%s208] sm:$0xff] %v759
      %822 = vst [vmem:[%s208 + $0x8] sm:$0xff] %v762
      %823 = vst [vmem:[%s208 + $0x10] sm:$0xff] %v767
      %824 = vst [vmem:[%s208 + $0x18] sm:$0xff] %v770
      %825 = vst [vmem:[%s208 + $0x20] sm:$0xff] %v775
      %826 = vst [vmem:[%s208 + $0x28] sm:$0xff] %v778
      %827 = vst [vmem:[%s208 + $0x30] sm:$0xff] %v783
      %828 = vst [vmem:[%s208 + $0x38] sm:$0xff] %v786
      %829 = vst [vmem:[%s208 + $0x40] sm:$0xff] %v791
      %830 = vst [vmem:[%s208 + $0x48] sm:$0xff] %v794
      %831 = vst [vmem:[%s208 + $0x50] sm:$0xff] %v799
      %832 = vst [vmem:[%s208 + $0x58] sm:$0xff] %v802
      %833 = vst [vmem:[%s208 + $0x60] sm:$0xff] %v807
      %834 = vst [vmem:[%s208 + $0x68] sm:$0xff] %v810
      %835 = vst [vmem:[%s208 + $0x70] sm:$0xff] %v815
      %836 = vst [vmem:[%s208 + $0x78] sm:$0xff] %v818
      %s837 = smul.u32 8, %s19
      %p838 = scmp.lt.s32.totalorder %s18, 1
      %s839 = scalar_select %p838, %s18, 1
      %p840 = scmp.lt.s32.totalorder %s837, 15
      %s841 = scalar_select %p840, %s837, 15
      %s842 = smul.addr %s841, 2
      %s843 = smul.addr %s839, 32
      %s844 = sadd.s32 %s842, %s843
      %s845 = smul.addr %s844, 8
      %s846 = scalar_lea.vmem %s3, %s845
      // Predicated region
      $region33: #{separable_conv2d.1} parent=31 // pred_check
        %p847 = pneg %p118
      $region34: #{separable_conv2d.1} parent=31 // pred_check_branch
        %849 = sbr.rel (%p847) target = $region36
      $region35: #{separable_conv2d.1} parent=31 // pred_region
        %s850 = smul.u32 8, %s19
      $region36: #{separable_conv2d.1} parent=31 // pred_fallthru
        _
    $region32: #{separable_conv2d.1} parent=5 // pred_fallthru
      _
    %p851 = scmp.le.s32.totalorder 2, %s9
    // Predicated region
    $region37: #{separable_conv2d.1} parent=5 // pred_check
      %p852 = pneg %p851
    $region38: #{separable_conv2d.1} parent=5 // pred_check_branch
      %854 = sbr.rel (%p852) target = $region40
    $region39: #{separable_conv2d.1} parent=5 // pred_region
      %s855 = ssub.s32 %s9, 2
      // Predicated region
      $region41: #{separable_conv2d.1} parent=39 // pred_check
        %p856 = pneg %p124
      $region42: #{separable_conv2d.1} parent=39 // pred_check_branch
        %858 = sbr.rel (%p856) target = $region44
      $region43: #{separable_conv2d.1} parent=39 // pred_region
        %s859 = smul.u32 8, %s21
        %p860 = scmp.lt.s32.totalorder %s20, 1
        %s861 = scalar_select %p860, %s20, 1
        %p862 = scmp.lt.s32.totalorder %s859, 15
        %s863 = scalar_select %p862, %s859, 15
        %s864 = smul.addr %s863, 2
        %s865 = smul.addr %s861, 32
        %s866 = sadd.s32 %s864, %s865
        %s867 = smul.addr %s866, 8
        %s868 = scalar_lea.vmem %s3, %s867
      $region44: #{separable_conv2d.1} parent=39 // pred_fallthru
        _
    $region40: #{separable_conv2d.1} parent=5 // pred_fallthru
      _
  $region6: #{separable_conv2d.1} parent=0 // loop_footer
    %s13 = sadd.s32 1, %s9
  $region7: #{separable_conv2d.1} parent=0 // loop_footer_branch
    %8 = sbr.rel target = $region3
  $region8: #{separable_conv2d.1} parent=0 // loop_exit
    _

</llo_original>
